<compile_context>
chip_gen: v5e
topology: v5e:2x2
jax: 0.10.0
libtpu: 0.0.40
codegen_flags: <defaults>
</compile_context>

<pallas_src>
import math

import jax
import jax.numpy as jnp
from jax.experimental import pallas as pl
from jax.experimental.pallas import tpu as pltpu


def _round_up(n, m):
    return ((n + m - 1) // m) * m


def _vmem_capacity_bytes():
    try:
        return int(pltpu.get_tpu_info().vmem_capacity_bytes)
    except Exception:
        return 64 << 20  # conservative default (v7x per-TensorCore VMEM)


def _cosine_linear_kernel(x_ref, w_ref, b_ref, inv_x_ref, o_ref):
    # x_ref:     (TM, Kp) bf16  raw (un-normalized) activations tile
    # w_ref:     (TN, Kp) bf16  row-normalized weights (inv_w pre-folded)
    # b_ref:     (1, TN)  f32   normalized bias row (zeros when no bias)
    # inv_x_ref: (TM, 1)  f32   sigma * rsqrt(||x_cat||^2), precomputed
    # o_ref:     (TM, TN) f32
    s = jax.lax.dot_general(
        x_ref[...], w_ref[...],
        dimension_numbers=(((1,), (1,)), ((), ())),   # contract last dims (no w.T)
        preferred_element_type=jnp.float32)           # f32 accumulation on MXU
    # Fused epilogue: one add + one (broadcast) multiply per output element.
    o_ref[...] = (inv_x_ref[...] * (s + b_ref[...])).astype(o_ref.dtype)


def cosine_linear(x, weight, bias=None, sigma=None, *, tm_max=None, tn_max=None):
    """Pallas CosineLinear forward.

    x:      (B, in_features) float32
    weight: (out_features, in_features) float32
    bias:   (out_features, 1) float32 or None
    sigma:  () float32 or None
    returns (B, out_features) float32
    """
    eps = 1e-8
    eps_sq = eps * eps

    x = jnp.asarray(x, jnp.float32)
    weight = jnp.asarray(weight, jnp.float32)
    B, K = x.shape
    O, K2 = weight.shape
    assert K == K2, (K, K2)

    # --- generation-aware tile / VMEM budgets --------------------------------
    vmem_cap = _vmem_capacity_bytes()
    big_vmem = vmem_cap >= (100 << 20)          # v5e / v6e: 128 MiB per TC
    if tm_max is None:
        tm_max = 512 if big_vmem else 256       # v7x: 64 MiB per TC
    if tn_max is None:
        tn_max = 512 if big_vmem else 256
    vmem_budget = (96 << 20) if big_vmem else (44 << 20)

    # --- normalization factors, computed once in f32 by XLA ------------------
    if bias is not None:
        b_col = jnp.reshape(jnp.asarray(bias, jnp.float32), (O,))
        x_sq_offset = 1.0                       # ones column of x_cat
    else:
        b_col = jnp.zeros((O,), jnp.float32)
        x_sq_offset = 0.0

    w_sq = jnp.sum(weight * weight, axis=1) + b_col * b_col           # (O,)
    inv_w = jax.lax.rsqrt(jnp.maximum(w_sq, eps_sq))                  # (O,)
    w_n = weight * inv_w[:, None]                                     # (O, K)
    b_n_row = (b_col * inv_w)[None, :]                                # (1, O)

    x_sq = jnp.sum(x * x, axis=1, keepdims=True) + x_sq_offset        # (B, 1)
    inv_x = jax.lax.rsqrt(jnp.maximum(x_sq, eps_sq))                  # (B, 1)
    if sigma is not None:
        inv_x = inv_x * jnp.reshape(jnp.asarray(sigma, jnp.float32), ())

    # --- padding: lane-dense K / O, sublane-aligned B ------------------------
    K_pad = _round_up(K, 128)
    B_pad = _round_up(B, 8)
    O_pad = _round_up(O, 128)
    TM = min(tm_max, B_pad)
    TN = min(tn_max, O_pad)

    # Double-buffered working set (bf16 x/W tiles, f32 bias/inv_x/out tiles).
    def _tile_bytes(tm, tn):
        return 2 * (2 * tm * K_pad + 2 * tn * K_pad + 4 * tn + 4 * tm + 4 * tm * tn)

    while _tile_bytes(TM, TN) > vmem_budget and (TM > 8 or TN > 128):
        if TM >= TN and TM > 8:
            TM = max(8, TM // 2)
        elif TN > 128:
            TN = max(128, TN // 2)
        else:
            break
    # TODO(synk): for in_features so large that a single (TM+TN) x K_pad slab
    # cannot fit VMEM, add a K grid axis ("arbitrary") with an f32 acc scratch.

    B_pad = _round_up(B_pad, TM)
    O_pad = _round_up(O_pad, TN)

    # bf16 operands in HBM (norms already taken from the f32 originals).
    x_p = jnp.pad(x, ((0, B_pad - B), (0, K_pad - K))).astype(jnp.bfloat16)
    w_p = jnp.pad(w_n, ((0, O_pad - O), (0, K_pad - K))).astype(jnp.bfloat16)
    b_p = jnp.pad(b_n_row, ((0, 0), (0, O_pad - O)))                  # f32
    inv_x_p = jnp.pad(inv_x, ((0, B_pad - B), (0, 0)))                # f32

    nb = B_pad // TM
    no = O_pad // TN

    # --- grid order: stream the larger of x / W from HBM exactly once --------
    bytes_x = B_pad * K_pad * 2
    bytes_w = O_pad * K_pad * 2
    traffic_batch_outer = bytes_x + nb * bytes_w    # x once, W re-read nb times
    traffic_out_outer = bytes_w + no * bytes_x      # W once, x re-read no times

    if traffic_batch_outer <= traffic_out_outer:
        grid = (nb, no)
        x_map = lambda i, j: (i, 0)
        w_map = lambda i, j: (j, 0)
        b_map = lambda i, j: (0, j)
        v_map = lambda i, j: (i, 0)
        o_map = lambda i, j: (i, j)
    else:
        grid = (no, nb)
        x_map = lambda j, i: (i, 0)
        w_map = lambda j, i: (j, 0)
        b_map = lambda j, i: (0, j)
        v_map = lambda j, i: (i, 0)
        o_map = lambda j, i: (i, j)

    vmem_limit = int(min(max(_tile_bytes(TM, TN) + (4 << 20), 32 << 20),
                         vmem_budget))

    out_pad = pl.pallas_call(
        _cosine_linear_kernel,
        out_shape=jax.ShapeDtypeStruct((B_pad, O_pad), jnp.float32),
        grid_spec=pltpu.PrefetchScalarGridSpec(
            num_scalar_prefetch=0,
            grid=grid,
            in_specs=[
                pl.BlockSpec((TM, K_pad), x_map),   # x tile (bf16)
                pl.BlockSpec((TN, K_pad), w_map),   # normalized W tile (bf16)
                pl.BlockSpec((1, TN), b_map),       # normalized bias row (f32)
                pl.BlockSpec((TM, 1), v_map),       # sigma*inv_x column (f32)
            ],
            out_specs=pl.BlockSpec((TM, TN), o_map),
        ),
        compiler_params=pltpu.CompilerParams(
            dimension_semantics=("parallel", "parallel"),
            vmem_limit_bytes=vmem_limit,
        ),
    )(x_p, w_p, b_p, inv_x_p)

    return out_pad[:B, :O]


def _reference(x, weight, bias, sigma):
    eps = 1e-8
    if bias is not None:
        x = jnp.concatenate([x, jnp.ones((x.shape[0], 1), x.dtype)], axis=1)
        w = jnp.concatenate([weight, bias.astype(weight.dtype)], axis=1)
    else:
        w = weight
    xn = x / jnp.maximum(jnp.linalg.norm(x, axis=1, keepdims=True), eps)
    wn = w / jnp.maximum(jnp.linalg.norm(w, axis=1, keepdims=True), eps)
    out = xn @ wn.T
    if sigma is not None:
        out = sigma * out
    return out


def _check(out, ref, tag):
    assert out.shape == ref.shape, (tag, out.shape, ref.shape)
    err = float(jnp.max(jnp.abs(out - ref)))
    # bf16 MXU operands (f32 accumulate / f32 norms) -> loosened tolerance.
    assert jnp.allclose(out, ref, atol=2e-2, rtol=2e-2), (tag, err)


if __name__ == "__main__":
    key = jax.random.PRNGKey(0)
    k_x, k_w, k_b, k_x2, k_w2, k_b2 = jax.random.split(key, 6)

    # --- case 1: bias + sigma path, small shapes (reset_parameters-style init)
    in_features, out_features, batch = 32, 16, 8
    x = jax.random.normal(k_x, (batch, in_features), dtype=jnp.float32)
    weight = 0.01 * jax.random.normal(k_w, (out_features, in_features),
                                      dtype=jnp.float32)
    bound = 1.0 / math.sqrt(in_features)
    bias = jax.random.uniform(
        k_b, (out_features, 1), minval=-bound, maxval=bound, dtype=jnp.float32)
    sigma = jnp.array(1.0, dtype=jnp.float32)

    out = jax.block_until_ready(cosine_linear(x, weight, bias=bias, sigma=sigma))
    _check(out, _reference(x, weight, bias, sigma), "bias+sigma")

    # --- case 2: no-bias / no-sigma path
    out_nb = jax.block_until_ready(cosine_linear(x, weight, bias=None, sigma=None))
    _check(out_nb, _reference(x, weight, None, None), "no-bias")

    # --- case 3: un-aligned shapes + large batch (exercises padding and the
    #             out-axis-outermost grid ordering via a small tm_max)
    in2, out2, batch2 = 96, 200, 136
    x2 = jax.random.normal(k_x2, (batch2, in2), dtype=jnp.float32)
    w2 = 0.01 * jax.random.normal(k_w2, (out2, in2), dtype=jnp.float32)
    b2 = jax.random.uniform(k_b2, (out2, 1), minval=-1.0 / math.sqrt(in2),
                            maxval=1.0 / math.sqrt(in2), dtype=jnp.float32)
    out2_arr = jax.block_until_ready(
        cosine_linear(x2, w2, bias=b2, sigma=sigma, tm_max=64, tn_max=128))
    _check(out2_arr, _reference(x2, w2, b2, sigma), "padded/out-outer")

    print("KERNEL_OK")
</pallas_src>

<mosaic_0001>
module attributes {stable_mosaic.version = 11 : i64} {
  func.func @_cosine_linear_kernel(%arg0: i32, %arg1: i32, %arg2: memref<8x128xbf16, #tpu.memory_space<vmem>>, %arg3: memref<128x128xbf16, #tpu.memory_space<vmem>>, %arg4: memref<1x128xf32, #tpu.memory_space<vmem>>, %arg5: memref<8x1xf32, #tpu.memory_space<vmem>>, %arg6: memref<8x128xf32, #tpu.memory_space<vmem>>) attributes {dimension_semantics = [#tpu.dimension_semantics<parallel>, #tpu.dimension_semantics<parallel>], iteration_bounds = array<i64: 1, 1>, scalar_prefetch = 0 : i64, scratch_operands = 0 : i64, tpu.core_type = #tpu.core_type<tc>, window_params = [{transform_indices = @transform_0, window_bounds = array<i64: 8, 128>}, {transform_indices = @transform_1, window_bounds = array<i64: 128, 128>}, {transform_indices = @transform_2, window_bounds = array<i64: 1, 128>}, {transform_indices = @transform_3, window_bounds = array<i64: 8, 1>}, {transform_indices = @transform_4, window_bounds = array<i64: 8, 128>}]} {
    %c0 = arith.constant 0 : index
    %c0_0 = arith.constant 0 : index
    %0 = vector.load %arg2[%c0, %c0_0] : memref<8x128xbf16, #tpu.memory_space<vmem>>, vector<8x128xbf16>
    %c0_1 = arith.constant 0 : index
    %c0_2 = arith.constant 0 : index
    %1 = vector.load %arg3[%c0_1, %c0_2] : memref<128x128xbf16, #tpu.memory_space<vmem>>, vector<128x128xbf16>
    %cst = arith.constant dense<0.000000e+00> : vector<8x128xf32>
    %2 = tpu.matmul %0, %1, %cst {dimension_numbers = #tpu.dot_dimension_numbers<[1], [1], [0], [0], [0, 0, 1, 0], [], []>} : vector<8x128xbf16>, vector<128x128xbf16>, vector<8x128xf32> -> vector<8x128xf32>
    %c0_3 = arith.constant 0 : index
    %c0_4 = arith.constant 0 : index
    %3 = vector.load %arg5[%c0_3, %c0_4] : memref<8x1xf32, #tpu.memory_space<vmem>>, vector<8x1xf32>
    %c0_5 = arith.constant 0 : index
    %c0_6 = arith.constant 0 : index
    %4 = vector.load %arg4[%c0_5, %c0_6] : memref<1x128xf32, #tpu.memory_space<vmem>>, vector<1x128xf32>
    %5 = vector.broadcast %4 : vector<1x128xf32> to vector<8x128xf32>
    %6 = arith.addf %2, %5 : vector<8x128xf32>
    %7 = vector.broadcast %3 : vector<8x1xf32> to vector<8x128xf32>
    %8 = arith.mulf %7, %6 : vector<8x128xf32>
    %c0_7 = arith.constant 0 : index
    %c0_8 = arith.constant 0 : index
    %9 = vector.load %arg6[%c0_7, %c0_8] : memref<8x128xf32, #tpu.memory_space<vmem>>, vector<8x128xf32>
    tpu.vector_store %arg6[%c0_7, %c0_8], %8 {strides = array<i32>} : memref<8x128xf32, #tpu.memory_space<vmem>>, vector<8x128xf32>,
    return
  }
  func.func @transform_0(%arg0: i32, %arg1: i32) -> (i32, i32) {
    %c0_i32 = arith.constant 0 : i32
    %c0_i32_0 = arith.constant 0 : i32
    return %arg0, %c0_i32 : i32, i32
  }
  func.func @transform_1(%arg0: i32, %arg1: i32) -> (i32, i32) {
    %c0_i32 = arith.constant 0 : i32
    %c0_i32_0 = arith.constant 0 : i32
    return %arg1, %c0_i32 : i32, i32
  }
  func.func @transform_2(%arg0: i32, %arg1: i32) -> (i32, i32) {
    %c0_i32 = arith.constant 0 : i32
    %c0_i32_0 = arith.constant 0 : i32
    return %c0_i32, %arg1 : i32, i32
  }
  func.func @transform_3(%arg0: i32, %arg1: i32) -> (i32, i32) {
    %c0_i32 = arith.constant 0 : i32
    %c0_i32_0 = arith.constant 0 : i32
    return %arg0, %c0_i32 : i32, i32
  }
  func.func @transform_4(%arg0: i32, %arg1: i32) -> (i32, i32) {
    %c0_i32 = arith.constant 0 : i32
    return %arg0, %arg1 : i32, i32
  }
}

</mosaic_0001>

<llo_original>
// kernel: tpu_custom_call.1
$region0: #{tpu_custom_call.1}
  #allocation0 [shape = 'u32[]', space=smem, size = 0x4, offset = 0x4, fixed_abs, tag = 'smem constant byte address 0x4 - core index']
  #allocation1 [shape = 'u32[72,128]{1,0:T(1,128)}', space=vmem, size = 0x9000, scoped, tag = 'internal scratch']
  %s0 = inlined_call_operand.vmem [shape: bf16[8,128], index: 0, kind: input, shape index: {}]
  %s1 = inlined_call_operand.hbm [shape: bf16[128,128], index: 1, kind: input, shape index: {}]
  %s2 = inlined_call_operand.vmem [shape: f32[1,128], index: 2, kind: input, shape index: {}]
  %s3 = inlined_call_operand.vmem [shape: f32[8,1], index: 3, kind: input, shape index: {}]
  %s4 = inlined_call_operand.hbm [shape: f32[8,128], index: 4, kind: output, shape index: {}]
  %s5 = sld [smem:[#allocation0]]
  $region30: #{tpu_custom_call.1} parent=0
    _
  %s7 = ssub.s32 1, %s5
  %s8 = scalar_select 0, %s7, %s5
  $region1: #{tpu_custom_call.1} parent=0
    #allocation2 [shape = 'u8[32768]{0}', space=vmem, size = 0x8000, scoped, tag = 'input window, operand 1, single buffered']
    #allocation3 [shape = 's32[1]{0}', space=sflag, size = 0x4, scoped, tag = 'scoped memory for tpu_custom_call.1']
    #allocation4 [shape = 's32[1]{0}', space=sflag, size = 0x4, scoped, tag = 'scoped memory for tpu_custom_call.1']
    #allocation5 [shape = 'u8[4096]{0}', space=vmem, size = 0x1000, scoped, tag = 'output window, operand 0, single buffered']
    %9 = vsyncpa [#allocation3], 0
    %10 = vsyncpa [#allocation4], 0
    // Predicated region
    $region2: #{tpu_custom_call.1} parent=1 // pred_check
      _
    $region3: #{tpu_custom_call.1} parent=1 // pred_check_branch
      %12 = sbr.rel (0) target = $region5
    $region4: #{tpu_custom_call.1} parent=1 // pred_region
      _
    $region5: #{tpu_custom_call.1} parent=1 // pred_fallthru
      _
    // Predicated region
    $region6: #{tpu_custom_call.1} parent=1 // pred_check
      _
    $region7: #{tpu_custom_call.1} parent=1 // pred_check_branch
      %14 = sbr.rel (0) target = $region9
    $region8: #{tpu_custom_call.1} parent=1 // pred_region
      %16 = vsyncadd [#allocation3], 0
      %s17 = sshll.u32 %s1, 4
      %s18 = int_to_ptr.hbm [resolvable:$true] %s17
      %s19 = sshll.u32 [#allocation2], 4
      %s20 = int_to_ptr.vmem [resolvable:$true] %s19
      %25 = dma.hbm_to_vmem [thread:$0]  %s18, 1024, %s20, [#allocation3], 64, 64, 4
    $region9: #{tpu_custom_call.1} parent=1 // pred_fallthru
      _
    // Predicated region
    $region10: #{tpu_custom_call.1} parent=1 // pred_check
      _
    $region11: #{tpu_custom_call.1} parent=1 // pred_check_branch
      %27 = sbr.rel (0) target = $region13
    $region12: #{tpu_custom_call.1} parent=1 // pred_region
      _
    $region13: #{tpu_custom_call.1} parent=1 // pred_fallthru
      _
    // Predicated region
    $region14: #{tpu_custom_call.1} parent=1 // pred_check
      _
    $region15: #{tpu_custom_call.1} parent=1 // pred_check_branch
      %29 = sbr.rel (0) target = $region17
    $region16: #{tpu_custom_call.1} parent=1 // pred_region
      _
    $region17: #{tpu_custom_call.1} parent=1 // pred_fallthru
      _
    // Predicated region
    $region18: #{tpu_custom_call.1} parent=1 // pred_check
      _
    $region19: #{tpu_custom_call.1} parent=1 // pred_check_branch
      %31 = sbr.rel (0) target = $region21
    $region20: #{tpu_custom_call.1} parent=1 // pred_region
      %33 = dma.done [#allocation3], 1024
    $region21: #{tpu_custom_call.1} parent=1 // pred_fallthru
      _
    %v34 = vld [vmem:[%s0] sm:$0xf]
    %v35 = vld [vmem:[#allocation2] sm:$0xf]
    %v36 = vld [vmem:[#allocation2 + $0x4] sm:$0xf]
    %v37 = vld [vmem:[#allocation2 + $0x8] sm:$0xf]
    %v38 = vld [vmem:[#allocation2 + $0xc] sm:$0xf]
    %v39 = vld [vmem:[#allocation2 + $0x10] sm:$0xf]
    %v40 = vld [vmem:[#allocation2 + $0x14] sm:$0xf]
    %v41 = vld [vmem:[#allocation2 + $0x18] sm:$0xf]
    %v42 = vld [vmem:[#allocation2 + $0x1c] sm:$0xf]
    %v43 = vld [vmem:[#allocation2 + $0x20] sm:$0xf]
    %v44 = vld [vmem:[#allocation2 + $0x24] sm:$0xf]
    %v45 = vld [vmem:[#allocation2 + $0x28] sm:$0xf]
    %v46 = vld [vmem:[#allocation2 + $0x2c] sm:$0xf]
    %v47 = vld [vmem:[#allocation2 + $0x30] sm:$0xf]
    %v48 = vld [vmem:[#allocation2 + $0x34] sm:$0xf]
    %v49 = vld [vmem:[#allocation2 + $0x38] sm:$0xf]
    %v50 = vld [vmem:[#allocation2 + $0x3c] sm:$0xf]
    %v51 = vld [vmem:[%s3] sm:$0xff]
    %v52 = vld [vmem:[%s2] sm:$0x1]
    %v54 = vperm.slane %v52, 0
    %v72 = vunpack.c.l.b16 %v35
    %v73 = vunpack.c.l.b16 %v36
    %v74 = vunpack.c.l.b16 %v37
    %v75 = vunpack.c.l.b16 %v38
    %v76 = vunpack.c.l.b16 %v39
    %v77 = vunpack.c.l.b16 %v40
    %v78 = vunpack.c.l.b16 %v41
    %v79 = vunpack.c.l.b16 %v42
    %v80 = vunpack.c.l.b16 %v43
    %v81 = vunpack.c.l.b16 %v44
    %v82 = vunpack.c.l.b16 %v45
    %v83 = vunpack.c.l.b16 %v46
    %v84 = vunpack.c.l.b16 %v47
    %v85 = vunpack.c.l.b16 %v48
    %v86 = vunpack.c.l.b16 %v49
    %v87 = vunpack.c.l.b16 %v50
    %v88 = vpack.c.b16 %v73, %v72
    %v89 = vpack.c.b16 %v75, %v74
    %v90 = vpack.c.b16 %v77, %v76
    %v91 = vpack.c.b16 %v79, %v78
    %v92 = vpack.c.b16 %v81, %v80
    %v93 = vpack.c.b16 %v83, %v82
    %v94 = vpack.c.b16 %v85, %v84
    %v95 = vpack.c.b16 %v87, %v86
    %104 = vmatpush.bf16.xpose.msra.mxu0 %v95
    %105 = vmatpush.bf16.xpose.msra.mxu0 %v94
    %106 = vmatpush.bf16.xpose.msra.mxu0 %v93
    %107 = vmatpush.bf16.xpose.msra.mxu0 %v92
    %108 = vmatpush.bf16.xpose.msra.mxu0 %v91
    %109 = vmatpush.bf16.xpose.msra.mxu0 %v90
    %110 = vmatpush.bf16.xpose.msra.mxu0 %v89
    %111 = vmatpush.bf16.xpose.msra.mxu0 %v88
    %112 = vmatmul.bf16.gmra.mxu0 %v34
    %v113 = vpop.f32.mrf.mxu0
    %v114 = vadd.f32 %v54, %v113
    %v115 = vpop.f32.mrf.mxu0
    %116 = vdwg.mxu0
    %118 = vset.pattern.permute.xlu0 0
    %119 = vperm.xlu0 %118, %v51
    %v120 = vpop.permute.xlu0 %119
    %v122 = vmul.f32 %v120, %v114
    %123 = vst [vmem:[#allocation5] sm:$0xff] %v122
    // Predicated region
    $region22: #{tpu_custom_call.1} parent=1 // pred_check
      _
    $region23: #{tpu_custom_call.1} parent=1 // pred_check_branch
      %125 = sbr.rel (0) target = $region25
    $region24: #{tpu_custom_call.1} parent=1 // pred_region
      %127 = vsyncadd [#allocation4], 0
      %s129 = sshll.u32 [#allocation5], 4
      %s130 = int_to_ptr.vmem [resolvable:$true] %s129
      %s131 = sshll.u32 %s4, 4
      %s132 = int_to_ptr.hbm [resolvable:$true] %s131
      %134 = dma.vmem_to_hbm [thread:$0]  %s130, 128, %s132, [#allocation4]
    $region25: #{tpu_custom_call.1} parent=1 // pred_fallthru
      _
    // Predicated region
    $region26: #{tpu_custom_call.1} parent=1 // pred_check
      _
    $region27: #{tpu_custom_call.1} parent=1 // pred_check_branch
      %136 = sbr.rel (0) target = $region29
    $region28: #{tpu_custom_call.1} parent=1 // pred_region
      %138 = dma.done [#allocation4], 128
    $region29: #{tpu_custom_call.1} parent=1 // pred_fallthru
      _
    %139 = vsyncpa [#allocation3], 1
    %140 = vsyncpa [#allocation4], 1

</llo_original>
